<compile_context>
chip_gen: v6e
topology: v6e:2x2x1
jax: 0.10.0
libtpu: 0.0.40
codegen_flags: <defaults>
</compile_context>

<pallas_src>
import functools

import jax
import jax.numpy as jnp
from jax.experimental import pallas as pl
from jax.experimental.pallas import tpu as pltpu

_LANES = 128


def _round_up(x, m):
    return ((x + m - 1) // m) * m


def _sublane_multiple(*dtypes):
    """Minimum sublane multiple for packed layouts (8 f32, 16 bf16, 32 int8)."""
    return max(max(8, 32 // jnp.dtype(d).itemsize) for d in dtypes)


def _chip_config():
    """Returns (num_shards, max_tile_rows) for the local TPU generation."""
    try:
        kind = jax.devices()[0].device_kind.lower()
    except Exception:
        return 1, 4096
    if "v7" in kind or "tpu7" in kind:
        # 2 TensorCores, ~3.2 TB/s HBM: 4 MiB logit blocks keep the per-step
        # overhead hidden; 2x(2 inputs)x4 MiB = 16 MiB double-buffers << 64 MiB VMEM.
        return 2, 8192
    if "v4" in kind or "v5p" in kind:
        return 2, 4096          # megacore: 2 TensorCores share the parallel axis
    return 1, 4096              # v5e / v6e: single TC -> shard axis is pure overhead


def _distillation_loss_kernel(so_ref, yt_ref, scam_ref, tcam_ref, out_ref,
                              acc_ref, *, n_rows, n_logits, n_cam, w,
                              tile_r, tiles_per_shard):
    shard = pl.program_id(0)
    k = pl.program_id(1)

    @pl.when(k == 0)
    def _():
        acc_ref[...] = jnp.zeros_like(acc_ref)

    # ---- streamed student-loss partial: sum((so - yt)^2) over this tile ----
    # Mask rows past the end of the (minimally padded) logit array: the last
    # grid block may be ragged, and clamped shard-overhang blocks are fully
    # out of range.  The mask is driven by program ids, not the DMA'd data.
    row0 = (shard * tiles_per_shard + k) * tile_r
    row_ids = row0 + jax.lax.broadcasted_iota(jnp.int32, (tile_r, 1), 0)
    d = so_ref[...].astype(jnp.float32) - yt_ref[...].astype(jnp.float32)
    d = jnp.where(row_ids < n_rows, d, jnp.float32(0.0))
    # Pure VALU accumulation (vreg-group adds); the single cross-sublane /
    # cross-lane reduction is deferred to the finalize step.
    acc_ref[...] += jnp.sum((d * d).reshape(tile_r // 8, 8, _LANES), axis=0)

    # ---- finalize on the last reduction step of this shard ----
    @pl.when(k == pl.num_programs(1) - 1)
    def _():
        student_partial = jnp.sum(acc_ref[...]) / jnp.float32(n_logits)

        # Only shard 0 runs the CAM epilogue (two global min/max reductions +
        # normalised MSE); other shards just emit their student-loss partial.
        @pl.when(shard == 0)
        def _():
            t = tcam_ref[...].astype(jnp.float32)
            s = scam_ref[...].astype(jnp.float32)
            r, c = t.shape
            idx = (jax.lax.broadcasted_iota(jnp.int32, (r, c), 0) * c
                   + jax.lax.broadcasted_iota(jnp.int32, (r, c), 1))
            valid = idx < n_cam
            inf = jnp.float32(jnp.inf)
            t_min = jnp.min(jnp.where(valid, t, inf))
            t_max = jnp.max(jnp.where(valid, t, -inf))
            s_min = jnp.min(jnp.where(valid, s, inf))
            s_max = jnp.max(jnp.where(valid, s, -inf))
            # Exact scalar reciprocals (same eps as the PyTorch module); the
            # per-element divides become two multiplies + one fused subtract.
            inv_t = jnp.float32(1.0) / (t_max - t_min + jnp.float32(1e-8))
            inv_s = jnp.float32(1.0) / (s_max - s_min + jnp.float32(1e-8))
            shift = s_min * inv_s - t_min * inv_t
            cd = jnp.where(valid, s * inv_s - t * inv_t - shift,
                           jnp.float32(0.0))
            dist = jnp.sum(cd * cd) / jnp.float32(n_cam)
            out_ref[...] = (jnp.zeros(out_ref.shape, jnp.float32)
                            + student_partial + jnp.float32(w) * dist)

        @pl.when(shard != 0)
        def _():
            out_ref[...] = (jnp.zeros(out_ref.shape, jnp.float32)
                            + student_partial)


def _flatten_lane_dense(x, sub):
    """Flatten to (rows, 128) with rows % sub == 0 (layout-minimum pad only)."""
    flat = x.reshape(-1)
    rows = _round_up(pl.cdiv(flat.shape[0], _LANES), sub)
    padded = rows * _LANES
    if padded != flat.shape[0]:
        # At most sub*128 elements of zero padding (one layout tile); skipped
        # entirely when the flat size already divides.
        flat = jnp.pad(flat, (0, padded - flat.shape[0]))
    return flat.reshape(rows, _LANES)


def distillation_loss(student_output, y_true, student_cam, teacher_cam,
                      distillation_weight=0.1):
    """Fused DistillationLoss.forward (post-GradCAM) on TPU via Pallas.

    student_output, y_true  : (B, C, H, W) float32 (or bf16)
    student_cam, teacher_cam: (B, H, W)    float32 (or bf16)
    Returns a scalar float32 loss.
    """
    n_logits = int(student_output.size)
    n_cam = int(student_cam.size)
    assert int(y_true.size) == n_logits
    assert int(teacher_cam.size) == n_cam
    assert n_logits < 2**31 and n_cam < 2**31  # int32 row / element indices

    num_shards, max_tile_rows = _chip_config()

    # Lane-dense (rows, 128) views.  The ragged tail across grid tiles is
    # masked inside the kernel rather than materialised by a big wrapper pad.
    sub_l = _sublane_multiple(student_output.dtype, y_true.dtype)
    so2 = _flatten_lane_dense(student_output, sub_l)
    yt2 = _flatten_lane_dense(y_true, sub_l)
    n_rows = so2.shape[0]

    sub_c = _sublane_multiple(student_cam.dtype, teacher_cam.dtype)
    sc2 = _flatten_lane_dense(student_cam, sub_c)
    tc2 = _flatten_lane_dense(teacher_cam, sub_c)
    cam_rows = sc2.shape[0]

    # Reduction tiling: 2-4 MiB blocks so the fixed per-grid-step cost is
    # hidden behind the HBM-bound stream.
    tile_r = min(max_tile_rows, _round_up(pl.cdiv(n_rows, num_shards), sub_l))
    n_blocks = pl.cdiv(n_rows, tile_r)
    tiles_per_shard = pl.cdiv(n_blocks, num_shards)
    last_block = n_blocks - 1

    # Clamp so no block starts past the array; the kernel's program-id row
    # mask zeroes the overhang, so clamped duplicates contribute nothing.
    logit_map = lambda sh, k: (jnp.minimum(sh * tiles_per_shard + k,
                                           last_block), 0)
    logit_spec = pl.BlockSpec((tile_r, _LANES), logit_map)

    # CAMs stay fully VMEM-resident (constant index_map => single DMA); they
    # have no channel dim so they are C-times smaller than the logits.
    # TODO(synk): for CAMs beyond a few MiB (v7x has only 64 MiB VMEM) stream
    # their global min/max through a pre-pass / single-buffer them instead of
    # keeping both resident.
    cam_spec = pl.BlockSpec((cam_rows, _LANES), lambda sh, k: (0, 0))

    kernel = functools.partial(
        _distillation_loss_kernel,
        n_rows=n_rows, n_logits=n_logits, n_cam=n_cam,
        w=float(distillation_weight), tile_r=tile_r,
        tiles_per_shard=tiles_per_shard)

    logit_block_bytes = tile_r * _LANES * (so2.dtype.itemsize
                                           + yt2.dtype.itemsize)
    cam_bytes = int(sc2.size * sc2.dtype.itemsize
                    + tc2.size * tc2.dtype.itemsize)
    vmem_need = 2 * logit_block_bytes + 2 * cam_bytes + 4 * 8 * _LANES * 4
    vmem_limit = int(min(max(32 << 20, vmem_need + (8 << 20)), 48 << 20))

    bytes_accessed = int(so2.size * so2.dtype.itemsize
                         + yt2.size * yt2.dtype.itemsize
                         + cam_bytes + num_shards * 8 * _LANES * 4)
    cost = pl.CostEstimate(flops=int(3 * n_logits + 12 * n_cam),
                           transcendentals=0,
                           bytes_accessed=bytes_accessed)

    out = pl.pallas_call(
        kernel,
        out_shape=jax.ShapeDtypeStruct((num_shards, 8, _LANES), jnp.float32),
        grid_spec=pltpu.PrefetchScalarGridSpec(
            num_scalar_prefetch=0,
            grid=(num_shards, tiles_per_shard),
            in_specs=[logit_spec, logit_spec, cam_spec, cam_spec],
            out_specs=pl.BlockSpec((1, 8, _LANES), lambda sh, k: (sh, 0, 0)),
            scratch_shapes=[pltpu.VMEM((8, _LANES), jnp.float32)]),
        # TODO(synk): on v7x, verify with xprof that the leading "parallel"
        # axis actually engages both TensorCores; if not, switch that axis to
        # pltpu.CORE_PARALLEL (or restructure with pl.core_map).
        compiler_params=pltpu.CompilerParams(
            dimension_semantics=("parallel", "arbitrary"),
            vmem_limit_bytes=vmem_limit),
        cost_estimate=cost,
    )(so2, yt2, sc2, tc2)

    # Final scalar combine (per-shard partials are already divided by N).
    return jnp.sum(out[:, 0, 0])


def _reference(student_output, y_true, student_cam, teacher_cam, w=0.1):
    student_loss = jnp.mean((student_output - y_true) ** 2)
    t = (teacher_cam - teacher_cam.min()) / (teacher_cam.max() - teacher_cam.min() + 1e-8)
    s = (student_cam - student_cam.min()) / (student_cam.max() - student_cam.min() + 1e-8)
    dist = jnp.mean((s - t) ** 2)
    return student_loss + w * dist


if __name__ == "__main__":
    key = jax.random.PRNGKey(0)
    k1, k2, k3, k4 = jax.random.split(key, 4)

    B, C, H, W = 2, 4, 16, 16

    # Student logits and ground truth (NCHW), as fed to student_loss_fn.
    student_output = jax.random.normal(k1, (B, C, H, W), dtype=jnp.float32)
    y_true = jax.random.normal(k2, (B, C, H, W), dtype=jnp.float32)

    # TODO(synk): GradCAM (backward-hook based model introspection) has no
    # Pallas equivalent; deterministic surrogate heatmaps stand in for
    # compute_gradcam_heatmap(model, target_layer, x_tensor, None).
    teacher_cam = jax.nn.relu(jax.random.normal(k3, (B, H, W), dtype=jnp.float32))
    student_cam = jax.nn.relu(jax.random.normal(k4, (B, H, W), dtype=jnp.float32))

    loss = distillation_loss(student_output, y_true, student_cam, teacher_cam,
                             distillation_weight=0.1)
    loss = jax.block_until_ready(loss)

    ref = _reference(student_output, y_true, student_cam, teacher_cam, 0.1)
    assert jnp.allclose(loss, ref, rtol=1e-5, atol=1e-6), (loss, ref)

    print("KERNEL_OK")
</pallas_src>

<mosaic_0001>
module attributes {stable_mosaic.version = 11 : i64} {
  func.func @_distillation_loss_kernel(%arg0: i32, %arg1: i32, %arg2: memref<16x128xf32, #tpu.memory_space<vmem>>, %arg3: memref<16x128xf32, #tpu.memory_space<vmem>>, %arg4: memref<8x128xf32, #tpu.memory_space<vmem>>, %arg5: memref<8x128xf32, #tpu.memory_space<vmem>>, %arg6: memref<1x8x128xf32, #tpu.memory_space<vmem>>, %arg7: memref<8x128xf32, #tpu.memory_space<vmem>>) attributes {dimension_semantics = [#tpu.dimension_semantics<parallel>, #tpu.dimension_semantics<arbitrary>], iteration_bounds = array<i64: 1, 1>, scalar_prefetch = 0 : i64, scratch_operands = 1 : i64, tpu.core_type = #tpu.core_type<tc>, window_params = [{transform_indices = @transform_0, window_bounds = array<i64: 16, 128>}, {transform_indices = @transform_1, window_bounds = array<i64: 16, 128>}, {pipeline_mode = #tpu.pipeline_mode<synchronous>, transform_indices = @transform_2, window_bounds = array<i64: 8, 128>}, {pipeline_mode = #tpu.pipeline_mode<synchronous>, transform_indices = @transform_3, window_bounds = array<i64: 8, 128>}, {transform_indices = @transform_4, window_bounds = array<i64: 1, 8, 128>}]} {
    %c0_i32 = arith.constant 0 : i32
    %0 = arith.cmpi eq, %arg1, %c0_i32 : i32
    %1 = arith.extui %0 : i1 to i32
    %c0_i32_0 = arith.constant 0 : i32
    %2 = arith.cmpi ne, %1, %c0_i32_0 : i32
    scf.if %2 {
      %cst_12 = arith.constant 0.000000e+00 : f32
      %27 = vector.broadcast %cst_12 : f32 to vector<8x128xf32>
      %c0_13 = arith.constant 0 : index
      %c0_14 = arith.constant 0 : index
      %28 = vector.load %arg7[%c0_13, %c0_14] : memref<8x128xf32, #tpu.memory_space<vmem>>, vector<8x128xf32>
      tpu.vector_store %arg7[%c0_13, %c0_14], %27 {strides = array<i32>} : memref<8x128xf32, #tpu.memory_space<vmem>>, vector<8x128xf32>,
    } else {
    }
    %c1_i32 = arith.constant 1 : i32
    %3 = arith.muli %arg0, %c1_i32 : i32
    %4 = arith.addi %3, %arg1 : i32
    %c16_i32 = arith.constant 16 : i32
    %5 = arith.muli %4, %c16_i32 : i32
    %6 = tpu.iota {dimensions = array<i32: 0>} : vector<16x1xi32>
    %7 = vector.broadcast %5 : i32 to vector<16x1xi32>
    %8 = arith.addi %7, %6 : vector<16x1xi32>
    %c0 = arith.constant 0 : index
    %c0_1 = arith.constant 0 : index
    %9 = vector.load %arg2[%c0, %c0_1] : memref<16x128xf32, #tpu.memory_space<vmem>>, vector<16x128xf32>
    %c0_2 = arith.constant 0 : index
    %c0_3 = arith.constant 0 : index
    %10 = vector.load %arg3[%c0_2, %c0_3] : memref<16x128xf32, #tpu.memory_space<vmem>>, vector<16x128xf32>
    %11 = arith.subf %9, %10 : vector<16x128xf32>
    %c16_i32_4 = arith.constant 16 : i32
    %12 = vector.broadcast %c16_i32_4 : i32 to vector<16x1xi32>
    %13 = arith.cmpi slt, %8, %12 : vector<16x1xi32>
    %cst = arith.constant 0.000000e+00 : f32
    %14 = vector.shape_cast %13 : vector<16x1xi1> to vector<16x1xi1>
    %15 = vector.broadcast %14 : vector<16x1xi1> to vector<16x128xi1>
    %16 = vector.broadcast %cst : f32 to vector<16x128xf32>
    %17 = arith.select %15, %11, %16 : vector<16x128xi1>, vector<16x128xf32>
    %c0_5 = arith.constant 0 : index
    %c0_6 = arith.constant 0 : index
    %18 = vector.load %arg7[%c0_5, %c0_6] : memref<8x128xf32, #tpu.memory_space<vmem>>, vector<8x128xf32>
    %19 = arith.mulf %17, %17 : vector<16x128xf32>
    %20 = vector.shape_cast %19 : vector<16x128xf32> to vector<2x8x128xf32>
    %cst_7 = arith.constant dense<0.000000e+00> : vector<8x128xf32>
    %21 = vector.multi_reduction <add>, %20, %cst_7 [0] : vector<2x8x128xf32> to vector<8x128xf32>
    %22 = arith.addf %18, %21 : vector<8x128xf32>
    %c0_8 = arith.constant 0 : index
    %c0_9 = arith.constant 0 : index
    %23 = vector.load %arg7[%c0_8, %c0_9] : memref<8x128xf32, #tpu.memory_space<vmem>>, vector<8x128xf32>
    tpu.vector_store %arg7[%c0_8, %c0_9], %22 {strides = array<i32>} : memref<8x128xf32, #tpu.memory_space<vmem>>, vector<8x128xf32>,
    %c0_i32_10 = arith.constant 0 : i32
    %24 = arith.cmpi eq, %arg1, %c0_i32_10 : i32
    %25 = arith.extui %24 : i1 to i32
    %c0_i32_11 = arith.constant 0 : i32
    %26 = arith.cmpi ne, %25, %c0_i32_11 : i32
    scf.if %26 {
      %c0_12 = arith.constant 0 : index
      %c0_13 = arith.constant 0 : index
      %27 = vector.load %arg7[%c0_12, %c0_13] : memref<8x128xf32, #tpu.memory_space<vmem>>, vector<8x128xf32>
      %28 = vector.shape_cast %27 : vector<8x128xf32> to vector<1x8x128xf32>
      %cst_14 = arith.constant dense<0.000000e+00> : vector<1xf32>
      %29 = vector.multi_reduction <add>, %28, %cst_14 [1, 2] : vector<1x8x128xf32> to vector<1xf32>
      %30 = vector.shape_cast %29 : vector<1xf32> to vector<1x1x1xf32>
      %31 = vector.extract %30[0, 0, 0] : f32 from vector<1x1x1xf32>
      %cst_15 = arith.constant 2.048000e+03 : f32
      %32 = arith.divf %31, %cst_15 : f32
      %c0_i32_16 = arith.constant 0 : i32
      %33 = arith.cmpi eq, %arg0, %c0_i32_16 : i32
      %34 = arith.extui %33 : i1 to i32
      %c0_i32_17 = arith.constant 0 : i32
      %35 = arith.cmpi ne, %34, %c0_i32_17 : i32
      scf.if %35 {
        %c0_20 = arith.constant 0 : index
        %c0_21 = arith.constant 0 : index
        %39 = vector.load %arg5[%c0_20, %c0_21] : memref<8x128xf32, #tpu.memory_space<vmem>>, vector<8x128xf32>
        %c0_22 = arith.constant 0 : index
        %c0_23 = arith.constant 0 : index
        %40 = vector.load %arg4[%c0_22, %c0_23] : memref<8x128xf32, #tpu.memory_space<vmem>>, vector<8x128xf32>
        %41 = tpu.iota {dimensions = array<i32: 0>} : vector<8x128xi32>
        %c128_i32 = arith.constant 128 : i32
        %42 = vector.broadcast %c128_i32 : i32 to vector<8x128xi32>
        %43 = arith.muli %41, %42 : vector<8x128xi32>
        %44 = tpu.iota {dimensions = array<i32: 1>} : vector<8x128xi32>
        %45 = arith.addi %43, %44 : vector<8x128xi32>
        %c512_i32 = arith.constant 512 : i32
        %46 = vector.broadcast %c512_i32 : i32 to vector<8x128xi32>
        %47 = arith.cmpi slt, %45, %46 : vector<8x128xi32>
        %cst_24 = arith.constant 0x7F800000 : f32
        %48 = vector.broadcast %cst_24 : f32 to vector<8x128xf32>
        %49 = arith.select %47, %39, %48 : vector<8x128xi1>, vector<8x128xf32>
        %50 = vector.shape_cast %49 : vector<8x128xf32> to vector<1x8x128xf32>
        %cst_25 = arith.constant dense<0x7F800000> : vector<1xf32>
        %51 = vector.multi_reduction <minimumf>, %50, %cst_25 [1, 2] : vector<1x8x128xf32> to vector<1xf32>
        %52 = vector.shape_cast %51 : vector<1xf32> to vector<1x1x1xf32>
        %53 = vector.extract %52[0, 0, 0] : f32 from vector<1x1x1xf32>
        %cst_26 = arith.constant 0.000000e+00 : f32
        %cst_27 = arith.constant 0x7F800000 : f32
        %54 = arith.subf %cst_26, %cst_27 : f32
        %55 = vector.broadcast %54 : f32 to vector<8x128xf32>
        %56 = arith.select %47, %39, %55 : vector<8x128xi1>, vector<8x128xf32>
        %57 = vector.shape_cast %56 : vector<8x128xf32> to vector<1x8x128xf32>
        %cst_28 = arith.constant dense<0xFF800000> : vector<1xf32>
        %58 = vector.multi_reduction <maximumf>, %57, %cst_28 [1, 2] : vector<1x8x128xf32> to vector<1xf32>
        %59 = vector.shape_cast %58 : vector<1xf32> to vector<1x1x1xf32>
        %60 = vector.extract %59[0, 0, 0] : f32 from vector<1x1x1xf32>
        %cst_29 = arith.constant 0x7F800000 : f32
        %61 = vector.broadcast %cst_29 : f32 to vector<8x128xf32>
        %62 = arith.select %47, %40, %61 : vector<8x128xi1>, vector<8x128xf32>
        %63 = vector.shape_cast %62 : vector<8x128xf32> to vector<1x8x128xf32>
        %cst_30 = arith.constant dense<0x7F800000> : vector<1xf32>
        %64 = vector.multi_reduction <minimumf>, %63, %cst_30 [1, 2] : vector<1x8x128xf32> to vector<1xf32>
        %65 = vector.shape_cast %64 : vector<1xf32> to vector<1x1x1xf32>
        %66 = vector.extract %65[0, 0, 0] : f32 from vector<1x1x1xf32>
        %cst_31 = arith.constant 0.000000e+00 : f32
        %cst_32 = arith.constant 0x7F800000 : f32
        %67 = arith.subf %cst_31, %cst_32 : f32
        %68 = vector.broadcast %67 : f32 to vector<8x128xf32>
        %69 = arith.select %47, %40, %68 : vector<8x128xi1>, vector<8x128xf32>
        %70 = vector.shape_cast %69 : vector<8x128xf32> to vector<1x8x128xf32>
        %cst_33 = arith.constant dense<0xFF800000> : vector<1xf32>
        %71 = vector.multi_reduction <maximumf>, %70, %cst_33 [1, 2] : vector<1x8x128xf32> to vector<1xf32>
        %72 = vector.shape_cast %71 : vector<1xf32> to vector<1x1x1xf32>
        %73 = vector.extract %72[0, 0, 0] : f32 from vector<1x1x1xf32>
        %74 = arith.subf %60, %53 : f32
        %cst_34 = arith.constant 9.99999993E-9 : f32
        %75 = arith.addf %74, %cst_34 : f32
        %cst_35 = arith.constant 1.000000e+00 : f32
        %76 = arith.divf %cst_35, %75 : f32
        %77 = arith.subf %73, %66 : f32
        %cst_36 = arith.constant 9.99999993E-9 : f32
        %78 = arith.addf %77, %cst_36 : f32
        %cst_37 = arith.constant 1.000000e+00 : f32
        %79 = arith.divf %cst_37, %78 : f32
        %80 = arith.mulf %66, %79 : f32
        %81 = arith.mulf %53, %76 : f32
        %82 = arith.subf %80, %81 : f32
        %83 = vector.broadcast %79 : f32 to vector<8x128xf32>
        %84 = arith.mulf %40, %83 : vector<8x128xf32>
        %85 = vector.broadcast %76 : f32 to vector<8x128xf32>
        %86 = arith.mulf %39, %85 : vector<8x128xf32>
        %87 = arith.subf %84, %86 : vector<8x128xf32>
        %88 = vector.broadcast %82 : f32 to vector<8x128xf32>
        %89 = arith.subf %87, %88 : vector<8x128xf32>
        %cst_38 = arith.constant 0.000000e+00 : f32
        %90 = vector.broadcast %cst_38 : f32 to vector<8x128xf32>
        %91 = arith.select %47, %89, %90 : vector<8x128xi1>, vector<8x128xf32>
        %92 = arith.mulf %91, %91 : vector<8x128xf32>
        %93 = vector.shape_cast %92 : vector<8x128xf32> to vector<1x8x128xf32>
        %cst_39 = arith.constant dense<0.000000e+00> : vector<1xf32>
        %94 = vector.multi_reduction <add>, %93, %cst_39 [1, 2] : vector<1x8x128xf32> to vector<1xf32>
        %95 = vector.shape_cast %94 : vector<1xf32> to vector<1x1x1xf32>
        %96 = vector.extract %95[0, 0, 0] : f32 from vector<1x1x1xf32>
        %cst_40 = arith.constant 5.120000e+02 : f32
        %97 = arith.divf %96, %cst_40 : f32
        %cst_41 = arith.constant 0.000000e+00 : f32
        %98 = vector.broadcast %cst_41 : f32 to vector<1x8x128xf32>
        %99 = vector.broadcast %32 : f32 to vector<1x8x128xf32>
        %100 = arith.addf %98, %99 : vector<1x8x128xf32>
        %cst_42 = arith.constant 1.000000e-01 : f32
        %101 = arith.mulf %cst_42, %97 : f32
        %102 = vector.broadcast %101 : f32 to vector<1x8x128xf32>
        %103 = arith.addf %100, %102 : vector<1x8x128xf32>
        %c0_43 = arith.constant 0 : index
        %c0_44 = arith.constant 0 : index
        %c0_45 = arith.constant 0 : index
        %104 = vector.load %arg6[%c0_43, %c0_44, %c0_45] : memref<1x8x128xf32, #tpu.memory_space<vmem>>, vector<1x8x128xf32>
        tpu.vector_store %arg6[%c0_43, %c0_44, %c0_45], %103 {strides = array<i32>} : memref<1x8x128xf32, #tpu.memory_space<vmem>>, vector<1x8x128xf32>,
      } else {
      }
      %c0_i32_18 = arith.constant 0 : i32
      %36 = arith.cmpi ne, %arg0, %c0_i32_18 : i32
      %37 = arith.extui %36 : i1 to i32
      %c0_i32_19 = arith.constant 0 : i32
      %38 = arith.cmpi ne, %37, %c0_i32_19 : i32
      scf.if %38 {
        %cst_20 = arith.constant 0.000000e+00 : f32
        %39 = vector.broadcast %cst_20 : f32 to vector<1x8x128xf32>
        %40 = vector.broadcast %32 : f32 to vector<1x8x128xf32>
        %41 = arith.addf %39, %40 : vector<1x8x128xf32>
        %c0_21 = arith.constant 0 : index
        %c0_22 = arith.constant 0 : index
        %c0_23 = arith.constant 0 : index
        %42 = vector.load %arg6[%c0_21, %c0_22, %c0_23] : memref<1x8x128xf32, #tpu.memory_space<vmem>>, vector<1x8x128xf32>
        tpu.vector_store %arg6[%c0_21, %c0_22, %c0_23], %41 {strides = array<i32>} : memref<1x8x128xf32, #tpu.memory_space<vmem>>, vector<1x8x128xf32>,
      } else {
      }
    } else {
    }
    return
  }
  func.func @transform_0(%arg0: i32, %arg1: i32) -> (i32, i32) {
    %c1_i32 = arith.constant 1 : i32
    %0 = arith.muli %arg0, %c1_i32 : i32
    %1 = arith.addi %0, %arg1 : i32
    %c0_i32 = arith.constant 0 : i32
    %2 = arith.minsi %1, %c0_i32 : i32
    %c0_i32_0 = arith.constant 0 : i32
    %c0_i32_1 = arith.constant 0 : i32
    return %2, %c0_i32_0 : i32, i32
  }
  func.func @transform_1(%arg0: i32, %arg1: i32) -> (i32, i32) {
    %c1_i32 = arith.constant 1 : i32
    %0 = arith.muli %arg0, %c1_i32 : i32
    %1 = arith.addi %0, %arg1 : i32
    %c0_i32 = arith.constant 0 : i32
    %2 = arith.minsi %1, %c0_i32 : i32
    %c0_i32_0 = arith.constant 0 : i32
    %c0_i32_1 = arith.constant 0 : i32
    return %2, %c0_i32_0 : i32, i32
  }
  func.func @transform_2(%arg0: i32, %arg1: i32) -> (i32, i32) {
    %c0_i32 = arith.constant 0 : i32
    %c0_i32_0 = arith.constant 0 : i32
    %c0_i32_1 = arith.constant 0 : i32
    return %c0_i32, %c0_i32_0 : i32, i32
  }
  func.func @transform_3(%arg0: i32, %arg1: i32) -> (i32, i32) {
    %c0_i32 = arith.constant 0 : i32
    %c0_i32_0 = arith.constant 0 : i32
    %c0_i32_1 = arith.constant 0 : i32
    return %c0_i32, %c0_i32_0 : i32, i32
  }
  func.func @transform_4(%arg0: i32, %arg1: i32) -> (i32, i32, i32) {
    %c0_i32 = arith.constant 0 : i32
    %c0_i32_0 = arith.constant 0 : i32
    %c0_i32_1 = arith.constant 0 : i32
    return %arg0, %c0_i32, %c0_i32_0 : i32, i32, i32
  }
}

</mosaic_0001>

<llo_original>
// kernel: tpu_custom_call.1
$region0: #{tpu_custom_call.1}
  #allocation0 [shape = 'u32[]', space=smem, size = 0x4, offset = 0x4, fixed_abs, tag = 'smem constant byte address 0x4 - core index']
  #allocation1 [shape = 'u32[144,128]{1,0:T(1,128)}', space=vmem, size = 0x12000, scoped, tag = 'internal scratch']
  #allocation2 [shape = 'f32[8,128]{1,0:T(8,128)}', space=vmem, size = 0x1000, scoped, tag = 'scratch operand']
  %s0 = inlined_call_operand.hbm [shape: f32[16,128], index: 0, kind: input, shape index: {}]
  %s1 = inlined_call_operand.hbm [shape: f32[16,128], index: 1, kind: input, shape index: {}]
  %s2 = inlined_call_operand.hbm [shape: f32[8,128], index: 2, kind: input, shape index: {}]
  %s3 = inlined_call_operand.hbm [shape: f32[8,128], index: 3, kind: input, shape index: {}]
  %s4 = inlined_call_operand.hbm [shape: f32[1,8,128], index: 4, kind: output, shape index: {}]
  %s5 = sld [smem:[#allocation0]]
  $region58: #{tpu_custom_call.1} parent=0
    _
  %s7 = ssub.s32 1, %s5
  %s8 = scalar_select 0, %s7, %s5
  $region1: #{tpu_custom_call.1} parent=0
    #allocation3 [shape = 'u8[8192]{0}', space=vmem, size = 0x2000, scoped, tag = 'input window, operand 0, single buffered']
    #allocation4 [shape = 's32[1]{0}', space=sflag, size = 0x4, scoped, tag = 'scoped memory for tpu_custom_call.1']
    #allocation5 [shape = 's32[1]{0}', space=sflag, size = 0x4, scoped, tag = 'scoped memory for tpu_custom_call.1']
    #allocation6 [shape = 'u8[8192]{0}', space=vmem, size = 0x2000, scoped, tag = 'input window, operand 1, single buffered']
    #allocation7 [shape = 's32[1]{0}', space=sflag, size = 0x4, scoped, tag = 'scoped memory for tpu_custom_call.1']
    #allocation8 [shape = 'u8[4096]{0}', space=vmem, size = 0x1000, scoped, tag = 'input window, operand 2, single buffered']
    #allocation9 [shape = 'u8[4096]{0}', space=vmem, size = 0x1000, scoped, tag = 'input window, operand 3, single buffered']
    #allocation10 [shape = 's32[1]{0}', space=sflag, size = 0x4, scoped, tag = 'scoped memory for tpu_custom_call.1']
    #allocation11 [shape = 'u8[4096]{0}', space=vmem, size = 0x1000, scoped, tag = 'output window, operand 0, single buffered']
    %9 = vsyncpa [#allocation4], 0
    %10 = vsyncpa [#allocation7], 0
    %11 = vsyncpa [#allocation10], 0
    %12 = vsyncpa [#allocation5], 0
    // Predicated region
    $region2: #{tpu_custom_call.1} parent=1 // pred_check
      _
    $region3: #{tpu_custom_call.1} parent=1 // pred_check_branch
      %14 = sbr.rel (0) target = $region5
    $region4: #{tpu_custom_call.1} parent=1 // pred_region
      %s15 = sadd.s32 0, 0
      %p16 = scmp.lt.s32.totalorder %s15, 0
      %s17 = scalar_select %p16, %s15, 0
      %s18 = smul.u32 2, %s17
      %s20 = ssub.s32 256, 256
      %21 = vsyncadd [#allocation4], %s20
      %s22 = smul.addr %s18, 128
      %s23 = scalar_lea.hbm %s0, %s22
      %s24 = sshll.u32 [#allocation3], 4
      %s25 = int_to_ptr.vmem [resolvable:$true] %s24
      %30 = dma.hbm_to_vmem [thread:$0]  %s23, 256, %s25, [#allocation4], 128, 128, 8
    $region5: #{tpu_custom_call.1} parent=1 // pred_fallthru
      _
    // Predicated region
    $region6: #{tpu_custom_call.1} parent=1 // pred_check
      _
    $region7: #{tpu_custom_call.1} parent=1 // pred_check_branch
      %32 = sbr.rel (0) target = $region9
    $region8: #{tpu_custom_call.1} parent=1 // pred_region
      %s33 = sadd.s32 0, 0
      %p34 = scmp.lt.s32.totalorder %s33, 0
      %s35 = scalar_select %p34, %s33, 0
      %s36 = smul.u32 2, %s35
      %s38 = ssub.s32 256, 256
      %39 = vsyncadd [#allocation7], %s38
      %s40 = smul.addr %s36, 128
      %s41 = scalar_lea.hbm %s1, %s40
      %s42 = sshll.u32 [#allocation6], 4
      %s43 = int_to_ptr.vmem [resolvable:$true] %s42
      %48 = dma.hbm_to_vmem [thread:$0]  %s41, 256, %s43, [#allocation7], 128, 128, 8
    $region9: #{tpu_custom_call.1} parent=1 // pred_fallthru
      _
    // Predicated region
    $region10: #{tpu_custom_call.1} parent=1 // pred_check
      _
    $region11: #{tpu_custom_call.1} parent=1 // pred_check_branch
      %50 = sbr.rel (0) target = $region13
    $region12: #{tpu_custom_call.1} parent=1 // pred_region
      %s52 = ssub.s32 128, 128
      %53 = vsyncadd [#allocation7], %s52
      %s55 = sshll.u32 [#allocation8], 4
      %s56 = int_to_ptr.vmem [resolvable:$true] %s55
      %58 = dma.hbm_to_vmem [thread:$0]  %s2, 128, %s56, [#allocation7]
    $region13: #{tpu_custom_call.1} parent=1 // pred_fallthru
      _
    // Predicated region
    $region14: #{tpu_custom_call.1} parent=1 // pred_check
      _
    $region15: #{tpu_custom_call.1} parent=1 // pred_check_branch
      %60 = sbr.rel (0) target = $region17
    $region16: #{tpu_custom_call.1} parent=1 // pred_region
      %s62 = ssub.s32 128, 128
      %63 = vsyncadd [#allocation10], %s62
      %s65 = sshll.u32 [#allocation9], 4
      %s66 = int_to_ptr.vmem [resolvable:$true] %s65
      %68 = dma.hbm_to_vmem [thread:$0]  %s3, 128, %s66, [#allocation10]
    $region17: #{tpu_custom_call.1} parent=1 // pred_fallthru
      _
    // Predicated region
    $region18: #{tpu_custom_call.1} parent=1 // pred_check
      _
    $region19: #{tpu_custom_call.1} parent=1 // pred_check_branch
      %70 = sbr.rel (0) target = $region21
    $region20: #{tpu_custom_call.1} parent=1 // pred_region
      %71 = dma.done [#allocation4], 256
    $region21: #{tpu_custom_call.1} parent=1 // pred_fallthru
      _
    // Predicated region
    $region22: #{tpu_custom_call.1} parent=1 // pred_check
      _
    $region23: #{tpu_custom_call.1} parent=1 // pred_check_branch
      %73 = sbr.rel (0) target = $region25
    $region24: #{tpu_custom_call.1} parent=1 // pred_region
      %74 = dma.done [#allocation7], 256
    $region25: #{tpu_custom_call.1} parent=1 // pred_fallthru
      _
    // Predicated region
    $region26: #{tpu_custom_call.1} parent=1 // pred_check
      _
    $region27: #{tpu_custom_call.1} parent=1 // pred_check_branch
      %76 = sbr.rel (0) target = $region29
    $region28: #{tpu_custom_call.1} parent=1 // pred_region
      %77 = dma.done [#allocation7], 128
    $region29: #{tpu_custom_call.1} parent=1 // pred_fallthru
      _
    // Predicated region
    $region30: #{tpu_custom_call.1} parent=1 // pred_check
      _
    $region31: #{tpu_custom_call.1} parent=1 // pred_check_branch
      %79 = sbr.rel (0) target = $region33
    $region32: #{tpu_custom_call.1} parent=1 // pred_region
      %80 = dma.done [#allocation10], 128
    $region33: #{tpu_custom_call.1} parent=1 // pred_fallthru
      _
    %s81 = sadd.s32 0, 0
    %p82 = scmp.lt.s32.totalorder %s81, 0
    %s83 = scalar_select %p82, %s81, 0
    %s84 = smul.u32 2, %s83
    %s85 = sadd.s32 0, 0
    %p86 = scmp.lt.s32.totalorder %s85, 0
    %s87 = scalar_select %p86, %s85, 0
    %s88 = smul.u32 2, %s87
    %p89 = scmp.eq.s32.totalorder 0, 0
    // Predicated region
    $region34: #{tpu_custom_call.1} parent=1 // pred_check
      %p90 = pneg %p89
    $region35: #{tpu_custom_call.1} parent=1 // pred_check_branch
      %92 = sbr.rel (%p90) target = $region37
    $region36: #{tpu_custom_call.1} parent=1 // pred_region
      %93 = vst [vmem:[#allocation2] sm:$0xff] 0.0
    $region37: #{tpu_custom_call.1} parent=1 // pred_fallthru
      _
    %s94 = sadd.s32 0, 0
    %s95 = smul.u32 %s94, 16
    %v96 = vlaneseq
    %v97 = vshrl.u32 %v96, 7
    %v98 = vadd.s32 %v97, 8
    %v99 = vstv %s95
    %v100 = vadd.s32 %v99, %v97
    %v101 = vadd.s32 %v99, %v98
    %v102 = vld [vmem:[#allocation3] sm:$0xff]
    %v103 = vld [vmem:[#allocation3 + $0x8] sm:$0xff]
    %v104 = vld [vmem:[#allocation6] sm:$0xff]
    %v105 = vld [vmem:[#allocation6 + $0x8] sm:$0xff]
    %v106 = vsub.f32 %v102, %v104
    %v107 = vsub.f32 %v103, %v105
    %vm108 = vcmp.lt.s32.totalorder %v100, 16
    %vm109 = vcmp.lt.s32.totalorder %v101, 16
    %v110 = vsel %vm108, 1, 0
    %v111 = vsel %vm109, 1, 0
    %vm112 = vcmp.eq.s32.totalorder %v110, 1
    %vm113 = vcmp.eq.s32.totalorder %v111, 1
    %v114 = vsel %vm112, %v106, 0.0
    %v115 = vsel %vm113, %v107, 0.0
    %v116 = vld [vmem:[#allocation2] sm:$0xff]
    %v117 = vmul.f32 %v114, %v114
    %v118 = vmul.f32 %v115, %v115
    %v119 = vadd.f32 %v117, %v118
    %v120 = vadd.f32 %v116, %v119
    %121 = vst [vmem:[#allocation2] sm:$0xff] %v120
    // Predicated region
    $region38: #{tpu_custom_call.1} parent=1 // pred_check
      %p122 = pneg %p89
    $region39: #{tpu_custom_call.1} parent=1 // pred_check_branch
      %124 = sbr.rel (%p122) target = $region41
    $region40: #{tpu_custom_call.1} parent=1 // pred_region
      %v125 = vld [vmem:[#allocation2] sm:$0xff]
      %126 = vadd.xlane.f32.xlu0 %v125
      %v127 = vpop.xlane.xlu0 %126
      %v128 = vrot.slane %v127, 4
      %v129 = vadd.f32 %v127, %v128
      %v130 = vrot.slane %v129, 2
      %v131 = vadd.f32 %v129, %v130
      %v132 = vrot.slane %v131, 1
      %v133 = vadd.f32 %v131, %v132
      %s134 = vtos %v133
      %v135 = vrcp.pop 2048.0
      %s136 = vtos %v135
      %s137 = smul.f32 %s134, %s136
      %p138 = scmp.eq.s32.totalorder 0, 0
      // Predicated region
      $region42: #{tpu_custom_call.1} parent=40 // pred_check
        %p139 = pneg %p138
      $region43: #{tpu_custom_call.1} parent=40 // pred_check_branch
        %141 = sbr.rel (%p139) target = $region45
      $region44: #{tpu_custom_call.1} parent=40 // pred_region
        %v142 = vld [vmem:[#allocation9] sm:$0xff]
        %v143 = vld [vmem:[#allocation8] sm:$0xff]
        %v144 = vmul.u32 %v97, 128
        %v145 = vlaneseq
        %v146 = vand.u32 %v145, 127
        %v147 = vadd.s32 %v144, %v146
        %vm148 = vcmp.lt.s32.totalorder %v147, 512
        %v149 = vsel %vm148, %v142, inf
        %150 = vmin.xlane.f32.xlu0 %v149
        %v151 = vpop.xlane.xlu0 %150
        %v152 = vrot.slane %v151, 4
        %v153 = vmin.f32 %v151, %v152
        %v154 = vrot.slane %v153, 2
        %v155 = vmin.f32 %v153, %v154
        %v156 = vrot.slane %v155, 1
        %v157 = vmin.f32 %v155, %v156
        %s158 = vtos %v157
        %v159 = vsel %vm148, %v142, -inf
        %160 = vmax.xlane.f32.xlu0 %v159
        %v161 = vpop.xlane.xlu0 %160
        %v162 = vrot.slane %v161, 4
        %v163 = vmax.f32 %v161, %v162
        %v164 = vrot.slane %v163, 2
        %v165 = vmax.f32 %v163, %v164
        %v166 = vrot.slane %v165, 1
        %v167 = vmax.f32 %v165, %v166
        %s168 = vtos %v167
        %v169 = vsel %vm148, %v143, inf
        %170 = vmin.xlane.f32.xlu0 %v169
        %v171 = vpop.xlane.xlu0 %170
        %v172 = vrot.slane %v171, 4
        %v173 = vmin.f32 %v171, %v172
        %v174 = vrot.slane %v173, 2
        %v175 = vmin.f32 %v173, %v174
        %v176 = vrot.slane %v175, 1
        %v177 = vmin.f32 %v175, %v176
        %s178 = vtos %v177
        %v179 = vsel %vm148, %v143, -inf
        %180 = vmax.xlane.f32.xlu0 %v179
        %v181 = vpop.xlane.xlu0 %180
        %v182 = vrot.slane %v181, 4
        %v183 = vmax.f32 %v181, %v182
        %v184 = vrot.slane %v183, 2
        %v185 = vmax.f32 %v183, %v184
        %v186 = vrot.slane %v185, 1
        %v187 = vmax.f32 %v185, %v186
        %s188 = vtos %v187
        %s189 = ssub.f32 %s168, %s158
        %s190 = sadd.f32 %s189, 1e-08
        %v191 = vstv %s190
        %v192 = vrcp.pop %v191
        %s193 = vtos %v192
        %s194 = ssub.f32 %s188, %s178
        %s195 = sadd.f32 %s194, 1e-08
        %v196 = vstv %s195
        %v197 = vrcp.pop %v196
        %s198 = vtos %v197
        %s199 = smul.f32 %s178, %s198
        %s200 = smul.f32 %s158, %s193
        %s201 = ssub.f32 %s199, %s200
        %v202 = vstv %s198
        %v203 = vmul.f32 %v143, %v202
        %v204 = vstv %s193
        %v205 = vmul.f32 %v142, %v204
        %v206 = vsub.f32 %v203, %v205
        %v207 = vstv %s201
        %v208 = vsub.f32 %v206, %v207
        %v209 = vsel %vm148, %v208, 0.0
        %v210 = vmul.f32 %v209, %v209
        %211 = vadd.xlane.f32.xlu0 %v210
        %v212 = vpop.xlane.xlu0 %211
        %v213 = vrot.slane %v212, 4
        %v214 = vadd.f32 %v212, %v213
        %v215 = vrot.slane %v214, 2
        %v216 = vadd.f32 %v214, %v215
        %v217 = vrot.slane %v216, 1
        %v218 = vadd.f32 %v216, %v217
        %s219 = vtos %v218
        %v220 = vrcp.pop 512.0
        %s221 = vtos %v220
        %s222 = smul.f32 %s219, %s221
        %v223 = vstv %s137
        %v224 = vadd.f32 %v223, 0.0
        %s225 = smul.f32 %s222, 0.1
        %v226 = vstv %s225
        %v227 = vadd.f32 %v224, %v226
        %228 = vst [vmem:[#allocation11] sm:$0xff] %v227
      $region45: #{tpu_custom_call.1} parent=40 // pred_fallthru
        _
      %p229 = scmp.ne.s32.totalorder 0, 0
      // Predicated region
      $region46: #{tpu_custom_call.1} parent=40 // pred_check
        %p230 = pneg %p229
      $region47: #{tpu_custom_call.1} parent=40 // pred_check_branch
        %232 = sbr.rel (%p230) target = $region49
      $region48: #{tpu_custom_call.1} parent=40 // pred_region
        %v233 = vstv %s137
        %v234 = vadd.f32 %v233, 0.0
        %235 = vst [vmem:[#allocation11] sm:$0xff] %v234
      $region49: #{tpu_custom_call.1} parent=40 // pred_fallthru
        _
    $region41: #{tpu_custom_call.1} parent=1 // pred_fallthru
      _
    // Predicated region
    $region50: #{tpu_custom_call.1} parent=1 // pred_check
      _
    $region51: #{tpu_custom_call.1} parent=1 // pred_check_branch
      %237 = sbr.rel (0) target = $region53
    $region52: #{tpu_custom_call.1} parent=1 // pred_region
      %s239 = ssub.s32 128, 128
      %240 = vsyncadd [#allocation5], %s239
      %s242 = sshll.u32 [#allocation11], 4
      %s243 = int_to_ptr.vmem [resolvable:$true] %s242
      %245 = dma.vmem_to_hbm [thread:$0]  %s243, 128, %s4, [#allocation5]
    $region53: #{tpu_custom_call.1} parent=1 // pred_fallthru
      _
    // Predicated region
    $region54: #{tpu_custom_call.1} parent=1 // pred_check
      _
    $region55: #{tpu_custom_call.1} parent=1 // pred_check_branch
      %247 = sbr.rel (0) target = $region57
    $region56: #{tpu_custom_call.1} parent=1 // pred_region
      %248 = dma.done [#allocation5], 128
    $region57: #{tpu_custom_call.1} parent=1 // pred_fallthru
      _
    %249 = vsyncpa [#allocation4], 1
    %250 = vsyncpa [#allocation7], 1
    %251 = vsyncpa [#allocation10], 1
    %252 = vsyncpa [#allocation5], 1

</llo_original>
